<compile_context>
chip_gen: v6e
topology: v6e:2x2x1
jax: 0.10.0
libtpu: 0.0.40
codegen_flags: <defaults>
</compile_context>

<pallas_src>
import numpy as np
import jax
import jax.numpy as jnp
from jax.experimental import pallas as pl
from jax.experimental.pallas import tpu as pltpu


def _make_mlp_kernel(num_hidden):
    """Fused MLP kernel body for `num_hidden` hidden layers.

    Ref order: x, (w, b, scale, shift) * num_hidden, w_out, b_out, out
      w      : (D_in_l, D_out_l)   (already transposed: y = x @ w)
      b      : (1, D_out_l)
      scale  : (1, D_out_l) = gamma / sqrt(running_var + eps)
      shift  : (1, D_out_l) = beta - running_mean * scale
    """
    def kernel(*refs):
        x_ref = refs[0]
        out_ref = refs[-1]
        prm = refs[1:-1]

        h = x_ref[...]
        for l in range(num_hidden):
            w, b, scale, shift = prm[4 * l: 4 * l + 4]
            z = jnp.dot(h, w[...], preferred_element_type=jnp.float32)
            z = (z + b[...]) * scale[...] + shift[...]   # Linear bias + eval BatchNorm
            h = jnp.maximum(z, 0.0)                      # ReLU
            # TODO(synk): training-mode Dropout / batch-statistics BatchNorm are
            # stochastic / cross-batch ops; this kernel implements eval (inference)
            # semantics where Dropout is the identity and BN uses running stats.
        w_out, b_out = prm[4 * num_hidden], prm[4 * num_hidden + 1]
        out_ref[...] = (
            jnp.dot(h, w_out[...], preferred_element_type=jnp.float32) + b_out[...]
        ).astype(out_ref.dtype)

    return kernel


def mlp_forward(x, params, *, block_b=256):
    """x: (B, D_in) f32 -> (B, 1) f32.

    params: {"hidden": [(w, b, scale, shift), ...], "out": (w_out, b_out)}
    """
    B, D_in = x.shape
    hidden = params["hidden"]
    w_out, b_out = params["out"]
    num_hidden = len(hidden)

    # Batch tile: full batch for small B, otherwise a multiple-of-8 tile.
    if B <= block_b:
        tb = B
    else:
        tb = max(8, (block_b // 8) * 8)
    grid = (pl.cdiv(B, tb),)

    def full_block(arr):
        # Full-array block, constant index_map -> stays resident across grid steps.
        return pl.BlockSpec(arr.shape, lambda i: (0,) * arr.ndim)

    flat_params = []
    in_specs = [pl.BlockSpec((tb, D_in), lambda i: (i, 0))]
    for layer in hidden:
        for a in layer:
            flat_params.append(a)
            in_specs.append(full_block(a))
    for a in (w_out, b_out):
        flat_params.append(a)
        in_specs.append(full_block(a))

    out_spec = pl.BlockSpec((tb, 1), lambda i: (i, 0))

    # Advisory cost estimate so XLA schedules this kernel sensibly inside a
    # larger wide&deep graph.
    flops = 0
    d = D_in
    for (w, _, _, _) in hidden:
        flops += 2 * B * d * w.shape[1]
        d = w.shape[1]
    flops += 2 * B * d * 1
    bytes_accessed = 4 * (x.size + sum(int(a.size) for a in flat_params) + B)
    cost = pl.CostEstimate(flops=flops, transcendentals=0,
                           bytes_accessed=bytes_accessed)

    return pl.pallas_call(
        _make_mlp_kernel(num_hidden),
        out_shape=jax.ShapeDtypeStruct((B, 1), jnp.float32),
        grid_spec=pltpu.PrefetchScalarGridSpec(
            num_scalar_prefetch=0,
            grid=grid,
            in_specs=in_specs,
            out_specs=out_spec,
        ),
        compiler_params=pltpu.CompilerParams(
            dimension_semantics=("parallel",),
        ),
        cost_estimate=cost,
    )(x, *flat_params)


def make_params(input_dim, embed_dims, key, eps=1e-5):
    """Torch-like deterministic init; BN running stats folded to (scale, shift)."""
    hidden = []
    d = input_dim
    keys = jax.random.split(key, 2 * len(embed_dims) + 2)
    ki = 0
    for h in embed_dims:
        bound = 1.0 / float(np.sqrt(d))   # nn.Linear default init bound
        w = jax.random.uniform(keys[ki], (h, d), jnp.float32, -bound, bound); ki += 1
        b = jax.random.uniform(keys[ki], (h,), jnp.float32, -bound, bound); ki += 1
        # Non-trivial deterministic BatchNorm1d eval-mode parameters.
        r = jnp.arange(h, dtype=jnp.float32)
        gamma = 1.0 + 0.1 * r / h
        beta = 0.01 * r
        running_mean = 0.05 * r / h
        running_var = 1.0 + 0.2 * r / h
        scale = gamma / jnp.sqrt(running_var + eps)
        shift = beta - running_mean * scale
        hidden.append((w.T, b.reshape(1, h), scale.reshape(1, h), shift.reshape(1, h)))
        d = h
    bound = 1.0 / float(np.sqrt(d))
    w_out = jax.random.uniform(keys[ki], (1, d), jnp.float32, -bound, bound); ki += 1
    b_out = jax.random.uniform(keys[ki], (1,), jnp.float32, -bound, bound); ki += 1
    return {"hidden": hidden, "out": (w_out.T, b_out.reshape(1, 1))}


def reference(x, params):
    h = x
    for (w, b, scale, shift) in params["hidden"]:
        h = jnp.maximum((h @ w + b) * scale + shift, 0.0)
    w_out, b_out = params["out"]
    return h @ w_out + b_out


if __name__ == "__main__":
    key = jax.random.PRNGKey(0)
    k_prm, k_x = jax.random.split(key)

    B, input_dim = 8, 16
    embed_dims = (64, 32)
    dropout = 0.2   # eval mode -> identity (see TODO in kernel)

    params = make_params(input_dim, embed_dims, k_prm)
    x = jax.random.normal(k_x, (B, input_dim), jnp.float32)

    out = mlp_forward(x, params)
    out = jax.block_until_ready(out)

    ref = reference(x, params)
    assert out.shape == (B, 1), out.shape
    np.testing.assert_allclose(np.asarray(out), np.asarray(ref), rtol=1e-2, atol=1e-2)

    print("KERNEL_OK")
</pallas_src>

<mosaic_0001>
module attributes {stable_mosaic.version = 11 : i64} {
  func.func @kernel(%arg0: i32, %arg1: memref<8x16xf32, #tpu.memory_space<vmem>>, %arg2: memref<16x64xf32, #tpu.memory_space<vmem>>, %arg3: memref<1x64xf32, #tpu.memory_space<vmem>>, %arg4: memref<1x64xf32, #tpu.memory_space<vmem>>, %arg5: memref<1x64xf32, #tpu.memory_space<vmem>>, %arg6: memref<64x32xf32, #tpu.memory_space<vmem>>, %arg7: memref<1x32xf32, #tpu.memory_space<vmem>>, %arg8: memref<1x32xf32, #tpu.memory_space<vmem>>, %arg9: memref<1x32xf32, #tpu.memory_space<vmem>>, %arg10: memref<32x1xf32, #tpu.memory_space<vmem>>, %arg11: memref<1x1xf32, #tpu.memory_space<vmem>>, %arg12: memref<8x1xf32, #tpu.memory_space<vmem>>) attributes {dimension_semantics = [#tpu.dimension_semantics<parallel>], iteration_bounds = array<i64: 1>, scalar_prefetch = 0 : i64, scratch_operands = 0 : i64, tpu.core_type = #tpu.core_type<tc>, window_params = [{transform_indices = @transform_0, window_bounds = array<i64: 8, 16>}, {pipeline_mode = #tpu.pipeline_mode<synchronous>, transform_indices = @transform_1, window_bounds = array<i64: 16, 64>}, {pipeline_mode = #tpu.pipeline_mode<synchronous>, transform_indices = @transform_2, window_bounds = array<i64: 1, 64>}, {pipeline_mode = #tpu.pipeline_mode<synchronous>, transform_indices = @transform_3, window_bounds = array<i64: 1, 64>}, {pipeline_mode = #tpu.pipeline_mode<synchronous>, transform_indices = @transform_4, window_bounds = array<i64: 1, 64>}, {pipeline_mode = #tpu.pipeline_mode<synchronous>, transform_indices = @transform_5, window_bounds = array<i64: 64, 32>}, {pipeline_mode = #tpu.pipeline_mode<synchronous>, transform_indices = @transform_6, window_bounds = array<i64: 1, 32>}, {pipeline_mode = #tpu.pipeline_mode<synchronous>, transform_indices = @transform_7, window_bounds = array<i64: 1, 32>}, {pipeline_mode = #tpu.pipeline_mode<synchronous>, transform_indices = @transform_8, window_bounds = array<i64: 1, 32>}, {pipeline_mode = #tpu.pipeline_mode<synchronous>, transform_indices = @transform_9, window_bounds = array<i64: 32, 1>}, {pipeline_mode = #tpu.pipeline_mode<synchronous>, transform_indices = @transform_10, window_bounds = array<i64: 1, 1>}, {transform_indices = @transform_11, window_bounds = array<i64: 8, 1>}]} {
    %c0 = arith.constant 0 : index
    %c0_0 = arith.constant 0 : index
    %0 = vector.load %arg1[%c0, %c0_0] : memref<8x16xf32, #tpu.memory_space<vmem>>, vector<8x16xf32>
    %c0_1 = arith.constant 0 : index
    %c0_2 = arith.constant 0 : index
    %1 = vector.load %arg2[%c0_1, %c0_2] : memref<16x64xf32, #tpu.memory_space<vmem>>, vector<16x64xf32>
    %cst = arith.constant dense<0.000000e+00> : vector<8x64xf32>
    %2 = tpu.matmul %0, %1, %cst {dimension_numbers = #tpu.dot_dimension_numbers<[1], [0], [0], [1], [0, 0, 1, 1], [], []>} : vector<8x16xf32>, vector<16x64xf32>, vector<8x64xf32> -> vector<8x64xf32>
    %c0_3 = arith.constant 0 : index
    %c0_4 = arith.constant 0 : index
    %3 = vector.load %arg3[%c0_3, %c0_4] : memref<1x64xf32, #tpu.memory_space<vmem>>, vector<1x64xf32>
    %4 = vector.broadcast %3 : vector<1x64xf32> to vector<8x64xf32>
    %5 = arith.addf %2, %4 : vector<8x64xf32>
    %c0_5 = arith.constant 0 : index
    %c0_6 = arith.constant 0 : index
    %6 = vector.load %arg4[%c0_5, %c0_6] : memref<1x64xf32, #tpu.memory_space<vmem>>, vector<1x64xf32>
    %7 = vector.broadcast %6 : vector<1x64xf32> to vector<8x64xf32>
    %8 = arith.mulf %5, %7 : vector<8x64xf32>
    %c0_7 = arith.constant 0 : index
    %c0_8 = arith.constant 0 : index
    %9 = vector.load %arg5[%c0_7, %c0_8] : memref<1x64xf32, #tpu.memory_space<vmem>>, vector<1x64xf32>
    %10 = vector.broadcast %9 : vector<1x64xf32> to vector<8x64xf32>
    %11 = arith.addf %8, %10 : vector<8x64xf32>
    %cst_9 = arith.constant 0.000000e+00 : f32
    %12 = vector.broadcast %cst_9 : f32 to vector<8x64xf32>
    %13 = arith.maximumf %11, %12 : vector<8x64xf32>
    %c0_10 = arith.constant 0 : index
    %c0_11 = arith.constant 0 : index
    %14 = vector.load %arg6[%c0_10, %c0_11] : memref<64x32xf32, #tpu.memory_space<vmem>>, vector<64x32xf32>
    %cst_12 = arith.constant dense<0.000000e+00> : vector<8x32xf32>
    %15 = tpu.matmul %13, %14, %cst_12 {dimension_numbers = #tpu.dot_dimension_numbers<[1], [0], [0], [1], [0, 0, 1, 1], [], []>} : vector<8x64xf32>, vector<64x32xf32>, vector<8x32xf32> -> vector<8x32xf32>
    %c0_13 = arith.constant 0 : index
    %c0_14 = arith.constant 0 : index
    %16 = vector.load %arg7[%c0_13, %c0_14] : memref<1x32xf32, #tpu.memory_space<vmem>>, vector<1x32xf32>
    %17 = vector.broadcast %16 : vector<1x32xf32> to vector<8x32xf32>
    %18 = arith.addf %15, %17 : vector<8x32xf32>
    %c0_15 = arith.constant 0 : index
    %c0_16 = arith.constant 0 : index
    %19 = vector.load %arg8[%c0_15, %c0_16] : memref<1x32xf32, #tpu.memory_space<vmem>>, vector<1x32xf32>
    %20 = vector.broadcast %19 : vector<1x32xf32> to vector<8x32xf32>
    %21 = arith.mulf %18, %20 : vector<8x32xf32>
    %c0_17 = arith.constant 0 : index
    %c0_18 = arith.constant 0 : index
    %22 = vector.load %arg9[%c0_17, %c0_18] : memref<1x32xf32, #tpu.memory_space<vmem>>, vector<1x32xf32>
    %23 = vector.broadcast %22 : vector<1x32xf32> to vector<8x32xf32>
    %24 = arith.addf %21, %23 : vector<8x32xf32>
    %cst_19 = arith.constant 0.000000e+00 : f32
    %25 = vector.broadcast %cst_19 : f32 to vector<8x32xf32>
    %26 = arith.maximumf %24, %25 : vector<8x32xf32>
    %c0_20 = arith.constant 0 : index
    %c0_21 = arith.constant 0 : index
    %27 = vector.load %arg10[%c0_20, %c0_21] : memref<32x1xf32, #tpu.memory_space<vmem>>, vector<32x1xf32>
    %cst_22 = arith.constant dense<0.000000e+00> : vector<8x1xf32>
    %28 = tpu.matmul %26, %27, %cst_22 {dimension_numbers = #tpu.dot_dimension_numbers<[1], [0], [0], [1], [0, 0, 1, 1], [], []>} : vector<8x32xf32>, vector<32x1xf32>, vector<8x1xf32> -> vector<8x1xf32>
    %c0_23 = arith.constant 0 : index
    %c0_24 = arith.constant 0 : index
    %29 = vector.load %arg11[%c0_23, %c0_24] : memref<1x1xf32, #tpu.memory_space<vmem>>, vector<1x1xf32>
    %30 = vector.broadcast %29 : vector<1x1xf32> to vector<8x1xf32>
    %31 = arith.addf %28, %30 : vector<8x1xf32>
    %c0_25 = arith.constant 0 : index
    %c0_26 = arith.constant 0 : index
    %32 = vector.load %arg12[%c0_25, %c0_26] : memref<8x1xf32, #tpu.memory_space<vmem>>, vector<8x1xf32>
    tpu.vector_store %arg12[%c0_25, %c0_26], %31 {strides = array<i32>} : memref<8x1xf32, #tpu.memory_space<vmem>>, vector<8x1xf32>,
    return
  }
  func.func @transform_0(%arg0: i32) -> (i32, i32) {
    %c0_i32 = arith.constant 0 : i32
    %c0_i32_0 = arith.constant 0 : i32
    return %arg0, %c0_i32 : i32, i32
  }
  func.func @transform_1(%arg0: i32) -> (i32, i32) {
    %c0_i32 = arith.constant 0 : i32
    %c0_i32_0 = arith.constant 0 : i32
    %c0_i32_1 = arith.constant 0 : i32
    return %c0_i32, %c0_i32_0 : i32, i32
  }
  func.func @transform_2(%arg0: i32) -> (i32, i32) {
    %c0_i32 = arith.constant 0 : i32
    %c0_i32_0 = arith.constant 0 : i32
    %c0_i32_1 = arith.constant 0 : i32
    return %c0_i32, %c0_i32_0 : i32, i32
  }
  func.func @transform_3(%arg0: i32) -> (i32, i32) {
    %c0_i32 = arith.constant 0 : i32
    %c0_i32_0 = arith.constant 0 : i32
    %c0_i32_1 = arith.constant 0 : i32
    return %c0_i32, %c0_i32_0 : i32, i32
  }
  func.func @transform_4(%arg0: i32) -> (i32, i32) {
    %c0_i32 = arith.constant 0 : i32
    %c0_i32_0 = arith.constant 0 : i32
    %c0_i32_1 = arith.constant 0 : i32
    return %c0_i32, %c0_i32_0 : i32, i32
  }
  func.func @transform_5(%arg0: i32) -> (i32, i32) {
    %c0_i32 = arith.constant 0 : i32
    %c0_i32_0 = arith.constant 0 : i32
    %c0_i32_1 = arith.constant 0 : i32
    return %c0_i32, %c0_i32_0 : i32, i32
  }
  func.func @transform_6(%arg0: i32) -> (i32, i32) {
    %c0_i32 = arith.constant 0 : i32
    %c0_i32_0 = arith.constant 0 : i32
    %c0_i32_1 = arith.constant 0 : i32
    return %c0_i32, %c0_i32_0 : i32, i32
  }
  func.func @transform_7(%arg0: i32) -> (i32, i32) {
    %c0_i32 = arith.constant 0 : i32
    %c0_i32_0 = arith.constant 0 : i32
    %c0_i32_1 = arith.constant 0 : i32
    return %c0_i32, %c0_i32_0 : i32, i32
  }
  func.func @transform_8(%arg0: i32) -> (i32, i32) {
    %c0_i32 = arith.constant 0 : i32
    %c0_i32_0 = arith.constant 0 : i32
    %c0_i32_1 = arith.constant 0 : i32
    return %c0_i32, %c0_i32_0 : i32, i32
  }
  func.func @transform_9(%arg0: i32) -> (i32, i32) {
    %c0_i32 = arith.constant 0 : i32
    %c0_i32_0 = arith.constant 0 : i32
    %c0_i32_1 = arith.constant 0 : i32
    return %c0_i32, %c0_i32_0 : i32, i32
  }
  func.func @transform_10(%arg0: i32) -> (i32, i32) {
    %c0_i32 = arith.constant 0 : i32
    %c0_i32_0 = arith.constant 0 : i32
    %c0_i32_1 = arith.constant 0 : i32
    return %c0_i32, %c0_i32_0 : i32, i32
  }
  func.func @transform_11(%arg0: i32) -> (i32, i32) {
    %c0_i32 = arith.constant 0 : i32
    %c0_i32_0 = arith.constant 0 : i32
    return %arg0, %c0_i32 : i32, i32
  }
}

</mosaic_0001>

<llo_original>
// kernel: tpu_custom_call.1
$region0: #{tpu_custom_call.1}
  #allocation0 [shape = 'u32[]', space=smem, size = 0x4, offset = 0x4, fixed_abs, tag = 'smem constant byte address 0x4 - core index']
  #allocation1 [shape = 'u32[144,128]{1,0:T(1,128)}', space=vmem, size = 0x12000, scoped, tag = 'internal scratch']
  #allocation2 [shape = 'f32[1,1]{1,0:T(1,128)S(1)}', space=vmem, size = 0x200, scoped, tag = 'scoped memory for tpu_custom_call.1']
  %s0 = inlined_call_operand.vmem [shape: f32[8,16], index: 0, kind: input, shape index: {}]
  %s1 = inlined_call_operand.vmem [shape: f32[16,64], index: 1, kind: input, shape index: {}]
  %s2 = inlined_call_operand.vmem [shape: f32[1,64], index: 2, kind: input, shape index: {}]
  %s3 = inlined_call_operand.vmem [shape: f32[1,64], index: 3, kind: input, shape index: {}]
  %s4 = inlined_call_operand.vmem [shape: f32[1,64], index: 4, kind: input, shape index: {}]
  %s5 = inlined_call_operand.vmem [shape: f32[64,32], index: 5, kind: input, shape index: {}]
  %s6 = inlined_call_operand.vmem [shape: f32[1,32], index: 6, kind: input, shape index: {}]
  %s7 = inlined_call_operand.vmem [shape: f32[1,32], index: 7, kind: input, shape index: {}]
  %s8 = inlined_call_operand.vmem [shape: f32[1,32], index: 8, kind: input, shape index: {}]
  %s9 = inlined_call_operand.vmem [shape: f32[32,1], index: 9, kind: input, shape index: {}]
  %s10 = inlined_call_operand.<no memory space> [shape: f32[1,1], index: 10, kind: input, shape index: {}]
  %s11 = inlined_call_operand.vmem [shape: f32[8,1], index: 11, kind: output, shape index: {}]
  %s12 = sld [smem:[#allocation0]]
  $region54: #{tpu_custom_call.1} parent=0
    _
  %s14 = ssub.s32 1, %s12
  %s15 = scalar_select 0, %s14, %s12
  %v16 = vstv %s10
  %17 = vst [vmem:[#allocation2] sm:$0x1] %v16
  // Predicated region
  $region2: #{tpu_custom_call.1} parent=0 // pred_check
    _
  $region3: #{tpu_custom_call.1} parent=0 // pred_check_branch
    %19 = sbr.rel (0) target = $region5
  $region4: #{tpu_custom_call.1} parent=0 // pred_region
    _
  $region5: #{tpu_custom_call.1} parent=0 // pred_fallthru
    _
  // Predicated region
  $region6: #{tpu_custom_call.1} parent=0 // pred_check
    _
  $region7: #{tpu_custom_call.1} parent=0 // pred_check_branch
    %21 = sbr.rel (0) target = $region9
  $region8: #{tpu_custom_call.1} parent=0 // pred_region
    _
  $region9: #{tpu_custom_call.1} parent=0 // pred_fallthru
    _
  // Predicated region
  $region10: #{tpu_custom_call.1} parent=0 // pred_check
    _
  $region11: #{tpu_custom_call.1} parent=0 // pred_check_branch
    %23 = sbr.rel (0) target = $region13
  $region12: #{tpu_custom_call.1} parent=0 // pred_region
    _
  $region13: #{tpu_custom_call.1} parent=0 // pred_fallthru
    _
  // Predicated region
  $region14: #{tpu_custom_call.1} parent=0 // pred_check
    _
  $region15: #{tpu_custom_call.1} parent=0 // pred_check_branch
    %25 = sbr.rel (0) target = $region17
  $region16: #{tpu_custom_call.1} parent=0 // pred_region
    _
  $region17: #{tpu_custom_call.1} parent=0 // pred_fallthru
    _
  // Predicated region
  $region18: #{tpu_custom_call.1} parent=0 // pred_check
    _
  $region19: #{tpu_custom_call.1} parent=0 // pred_check_branch
    %27 = sbr.rel (0) target = $region21
  $region20: #{tpu_custom_call.1} parent=0 // pred_region
    _
  $region21: #{tpu_custom_call.1} parent=0 // pred_fallthru
    _
  // Predicated region
  $region22: #{tpu_custom_call.1} parent=0 // pred_check
    _
  $region23: #{tpu_custom_call.1} parent=0 // pred_check_branch
    %29 = sbr.rel (0) target = $region25
  $region24: #{tpu_custom_call.1} parent=0 // pred_region
    _
  $region25: #{tpu_custom_call.1} parent=0 // pred_fallthru
    _
  // Predicated region
  $region26: #{tpu_custom_call.1} parent=0 // pred_check
    _
  $region27: #{tpu_custom_call.1} parent=0 // pred_check_branch
    %31 = sbr.rel (0) target = $region29
  $region28: #{tpu_custom_call.1} parent=0 // pred_region
    _
  $region29: #{tpu_custom_call.1} parent=0 // pred_fallthru
    _
  // Predicated region
  $region30: #{tpu_custom_call.1} parent=0 // pred_check
    _
  $region31: #{tpu_custom_call.1} parent=0 // pred_check_branch
    %33 = sbr.rel (0) target = $region33
  $region32: #{tpu_custom_call.1} parent=0 // pred_region
    _
  $region33: #{tpu_custom_call.1} parent=0 // pred_fallthru
    _
  // Predicated region
  $region34: #{tpu_custom_call.1} parent=0 // pred_check
    _
  $region35: #{tpu_custom_call.1} parent=0 // pred_check_branch
    %35 = sbr.rel (0) target = $region37
  $region36: #{tpu_custom_call.1} parent=0 // pred_region
    _
  $region37: #{tpu_custom_call.1} parent=0 // pred_fallthru
    _
  // Predicated region
  $region38: #{tpu_custom_call.1} parent=0 // pred_check
    _
  $region39: #{tpu_custom_call.1} parent=0 // pred_check_branch
    %37 = sbr.rel (0) target = $region41
  $region40: #{tpu_custom_call.1} parent=0 // pred_region
    _
  $region41: #{tpu_custom_call.1} parent=0 // pred_fallthru
    _
  // Predicated region
  $region42: #{tpu_custom_call.1} parent=0 // pred_check
    _
  $region43: #{tpu_custom_call.1} parent=0 // pred_check_branch
    %39 = sbr.rel (0) target = $region45
  $region44: #{tpu_custom_call.1} parent=0 // pred_region
    _
  $region45: #{tpu_custom_call.1} parent=0 // pred_fallthru
    _
  %v40 = vld [vmem:[%s0] sm:$0xff]
  %v41 = vld [vmem:[%s1] sm:$0xff]
  %v42 = vld [vmem:[%s1 + $0x8] sm:$0xff]
  %v43 = vld [vmem:[%s2] sm:$0x1]
  %v45 = vlaneseq
  %v46 = vshrl.u32 %v45, 7
  %v47 = vsub.s32 0, %v46
  %v48 = vrot.slane %v43, %v47
  %vm50 = vcmask 130048
  %v52 = vsel %vm50, %v40, 0
  %54 = vmatprep.subr.mxu0 0.0
  %55 = vmatpush1.msra.mxu0 0.0
  %56 = vmatprep.subr.mxu0 0.0
  %57 = vmatpush1.msra.mxu0 0.0
  %58 = vmatprep.subr.mxu0 0.0
  %59 = vmatpush1.msra.mxu0 0.0
  %60 = vmatprep.subr.mxu0 0.0
  %61 = vmatpush1.msra.mxu0 0.0
  %62 = vmatprep.subr.mxu0 0.0
  %63 = vmatpush1.msra.mxu0 0.0
  %64 = vmatprep.subr.mxu0 0.0
  %65 = vmatpush1.msra.mxu0 0.0
  %66 = vmatprep.subr.mxu0 0.0
  %67 = vmatpush1.msra.mxu0 0.0
  %68 = vmatprep.subr.mxu0 0.0
  %69 = vmatpush1.msra.mxu0 0.0
  %70 = vmatprep.subr.mxu0 0.0
  %71 = vmatpush1.msra.mxu0 0.0
  %72 = vmatprep.subr.mxu0 0.0
  %73 = vmatpush1.msra.mxu0 0.0
  %74 = vmatprep.subr.mxu0 0.0
  %75 = vmatpush1.msra.mxu0 0.0
  %76 = vmatprep.subr.mxu0 0.0
  %77 = vmatpush1.msra.mxu0 0.0
  %78 = vmatprep.subr.mxu0 0.0
  %79 = vmatpush1.msra.mxu0 0.0
  %80 = vmatprep.subr.mxu0 0.0
  %81 = vmatpush1.msra.mxu0 0.0
  %82 = vmatprep.subr.mxu0 0.0
  %83 = vmatpush1.msra.mxu0 %v42
  %84 = vmatprep.subr.mxu0 0.0
  %85 = vmatpush1.msra.mxu0 %v41
  %86 = vmatprep.subr.mxu0 0.0
  %87 = vmatpush2.msra.mxu0 0.0
  %88 = vmatprep.subr.mxu0 0.0
  %89 = vmatpush2.msra.mxu0 0.0
  %90 = vmatprep.subr.mxu0 0.0
  %91 = vmatpush2.msra.mxu0 0.0
  %92 = vmatprep.subr.mxu0 0.0
  %93 = vmatpush2.msra.mxu0 0.0
  %94 = vmatprep.subr.mxu0 0.0
  %95 = vmatpush2.msra.mxu0 0.0
  %96 = vmatprep.subr.mxu0 0.0
  %97 = vmatpush2.msra.mxu0 0.0
  %98 = vmatprep.subr.mxu0 0.0
  %99 = vmatpush2.msra.mxu0 0.0
  %100 = vmatprep.subr.mxu0 0.0
  %101 = vmatpush2.msra.mxu0 0.0
  %102 = vmatprep.subr.mxu0 0.0
  %103 = vmatpush2.msra.mxu0 0.0
  %104 = vmatprep.subr.mxu0 0.0
  %105 = vmatpush2.msra.mxu0 0.0
  %106 = vmatprep.subr.mxu0 0.0
  %107 = vmatpush2.msra.mxu0 0.0
  %108 = vmatprep.subr.mxu0 0.0
  %109 = vmatpush2.msra.mxu0 0.0
  %110 = vmatprep.subr.mxu0 0.0
  %111 = vmatpush2.msra.mxu0 0.0
  %112 = vmatprep.subr.mxu0 0.0
  %113 = vmatpush2.msra.mxu0 0.0
  %114 = vmatprep.subr.mxu0 0.0
  %115 = vmatpush2.msra.mxu0 0.0
  %116 = vmatprep.subr.mxu0 0.0
  %117 = vmatpush2.msra.mxu0 0.0
  %118 = vmatprep.mubr.f32.mxu0 0.0
  %119 = vmatmul.mubr.f32.gmra.mxu0 %v52
  %v120 = vpop.f32.mrf.mxu0
  %v121 = vadd.f32 %v48, %v120
  %v122 = vpop.f32.mrf.mxu0
  %123 = vdwg.mxu0
  %v124 = vld [vmem:[%s3] sm:$0x1]
  %v126 = vlaneseq
  %v127 = vshrl.u32 %v126, 7
  %v128 = vsub.s32 0, %v127
  %v129 = vrot.slane %v124, %v128
  %v131 = vmul.f32 %v121, %v129
  %v132 = vld [vmem:[%s4] sm:$0x1]
  %v134 = vlaneseq
  %v135 = vshrl.u32 %v134, 7
  %v136 = vsub.s32 0, %v135
  %v137 = vrot.slane %v132, %v136
  %v139 = vadd.f32 %v131, %v137
  %v140 = vmax.f32 %v139, 0.0
  %v141 = vld [vmem:[%s5] sm:$0xff]
  %v142 = vld [vmem:[%s5 + $0x8] sm:$0xff]
  %v143 = vld [vmem:[%s5 + $0x10] sm:$0xff]
  %v144 = vld [vmem:[%s5 + $0x18] sm:$0xff]
  %v145 = vld [vmem:[%s5 + $0x20] sm:$0xff]
  %v146 = vld [vmem:[%s5 + $0x28] sm:$0xff]
  %v147 = vld [vmem:[%s5 + $0x30] sm:$0xff]
  %v148 = vld [vmem:[%s5 + $0x38] sm:$0xff]
  %v149 = vld [vmem:[%s6] sm:$0x1]
  %v151 = vlaneseq
  %v152 = vshrl.u32 %v151, 7
  %v153 = vsub.s32 0, %v152
  %v154 = vrot.slane %v149, %v153
  %vm156 = vcmask 523264
  %v158 = vsel %vm156, %v140, 0
  %160 = vmatprep.subr.mxu0 0.0
  %161 = vmatpush1.msra.mxu0 0.0
  %162 = vmatprep.subr.mxu0 0.0
  %163 = vmatpush1.msra.mxu0 0.0
  %164 = vmatprep.subr.mxu0 0.0
  %165 = vmatpush1.msra.mxu0 0.0
  %166 = vmatprep.subr.mxu0 0.0
  %167 = vmatpush1.msra.mxu0 0.0
  %168 = vmatprep.subr.mxu0 0.0
  %169 = vmatpush1.msra.mxu0 0.0
  %170 = vmatprep.subr.mxu0 0.0
  %171 = vmatpush1.msra.mxu0 0.0
  %172 = vmatprep.subr.mxu0 0.0
  %173 = vmatpush1.msra.mxu0 0.0
  %174 = vmatprep.subr.mxu0 0.0
  %175 = vmatpush1.msra.mxu0 0.0
  %176 = vmatprep.subr.mxu0 0.0
  %177 = vmatpush1.msra.mxu0 %v148
  %178 = vmatprep.subr.mxu0 0.0
  %179 = vmatpush1.msra.mxu0 %v147
  %180 = vmatprep.subr.mxu0 0.0
  %181 = vmatpush1.msra.mxu0 %v146
  %182 = vmatprep.subr.mxu0 0.0
  %183 = vmatpush1.msra.mxu0 %v145
  %184 = vmatprep.subr.mxu0 0.0
  %185 = vmatpush1.msra.mxu0 %v144
  %186 = vmatprep.subr.mxu0 0.0
  %187 = vmatpush1.msra.mxu0 %v143
  %188 = vmatprep.subr.mxu0 0.0
  %189 = vmatpush1.msra.mxu0 %v142
  %190 = vmatprep.subr.mxu0 0.0
  %191 = vmatpush1.msra.mxu0 %v141
  %192 = vmatprep.subr.mxu0 0.0
  %193 = vmatpush2.msra.mxu0 0.0
  %194 = vmatprep.subr.mxu0 0.0
  %195 = vmatpush2.msra.mxu0 0.0
  %196 = vmatprep.subr.mxu0 0.0
  %197 = vmatpush2.msra.mxu0 0.0
  %198 = vmatprep.subr.mxu0 0.0
  %199 = vmatpush2.msra.mxu0 0.0
  %200 = vmatprep.subr.mxu0 0.0
  %201 = vmatpush2.msra.mxu0 0.0
  %202 = vmatprep.subr.mxu0 0.0
  %203 = vmatpush2.msra.mxu0 0.0
  %204 = vmatprep.subr.mxu0 0.0
  %205 = vmatpush2.msra.mxu0 0.0
  %206 = vmatprep.subr.mxu0 0.0
  %207 = vmatpush2.msra.mxu0 0.0
  %208 = vmatprep.subr.mxu0 0.0
  %209 = vmatpush2.msra.mxu0 0.0
  %210 = vmatprep.subr.mxu0 0.0
  %211 = vmatpush2.msra.mxu0 0.0
  %212 = vmatprep.subr.mxu0 0.0
  %213 = vmatpush2.msra.mxu0 0.0
  %214 = vmatprep.subr.mxu0 0.0
  %215 = vmatpush2.msra.mxu0 0.0
  %216 = vmatprep.subr.mxu0 0.0
  %217 = vmatpush2.msra.mxu0 0.0
  %218 = vmatprep.subr.mxu0 0.0
  %219 = vmatpush2.msra.mxu0 0.0
  %220 = vmatprep.subr.mxu0 0.0
  %221 = vmatpush2.msra.mxu0 0.0
  %222 = vmatprep.subr.mxu0 0.0
  %223 = vmatpush2.msra.mxu0 0.0
  %224 = vmatprep.mubr.f32.mxu0 0.0
  %225 = vmatmul.mubr.f32.gmra.mxu0 %v158
  %v226 = vpop.f32.mrf.mxu0
  %v227 = vadd.f32 %v154, %v226
  %v228 = vpop.f32.mrf.mxu0
  %229 = vdwg.mxu0
  %v230 = vld [vmem:[%s7] sm:$0x1]
  %v232 = vlaneseq
  %v233 = vshrl.u32 %v232, 7
  %v234 = vsub.s32 0, %v233
  %v235 = vrot.slane %v230, %v234
  %v237 = vmul.f32 %v227, %v235
  %v238 = vld [vmem:[%s8] sm:$0x1]
  %v240 = vlaneseq
  %v241 = vshrl.u32 %v240, 7
  %v242 = vsub.s32 0, %v241
  %v243 = vrot.slane %v238, %v242
  %v245 = vadd.f32 %v237, %v243
  %v246 = vmax.f32 %v245, 0.0
  %v247 = vld [vmem:[%s9] sm:$0xff]
  %v248 = vld [vmem:[%s9 + $0x8] sm:$0xff]
  %v249 = vld [vmem:[%s9 + $0x10] sm:$0xff]
  %v250 = vld [vmem:[%s9 + $0x18] sm:$0xff]
  %v251 = vld [vmem:[#allocation2] sm:$0x1]
  %v253 = vlaneseq
  %v254 = vshrl.u32 %v253, 7
  %v255 = vsub.s32 0, %v254
  %v256 = vrot.slane %v251, %v255
  %vm258 = vcmask 261120
  %v260 = vsel %vm258, %v246, 0
  %262 = vmatprep.subr.mxu0 0.0
  %263 = vmatpush1.msra.mxu0 0.0
  %264 = vmatprep.subr.mxu0 0.0
  %265 = vmatpush1.msra.mxu0 0.0
  %266 = vmatprep.subr.mxu0 0.0
  %267 = vmatpush1.msra.mxu0 0.0
  %268 = vmatprep.subr.mxu0 0.0
  %269 = vmatpush1.msra.mxu0 0.0
  %270 = vmatprep.subr.mxu0 0.0
  %271 = vmatpush1.msra.mxu0 0.0
  %272 = vmatprep.subr.mxu0 0.0
  %273 = vmatpush1.msra.mxu0 0.0
  %274 = vmatprep.subr.mxu0 0.0
  %275 = vmatpush1.msra.mxu0 0.0
  %276 = vmatprep.subr.mxu0 0.0
  %277 = vmatpush1.msra.mxu0 0.0
  %278 = vmatprep.subr.mxu0 0.0
  %279 = vmatpush1.msra.mxu0 0.0
  %280 = vmatprep.subr.mxu0 0.0
  %281 = vmatpush1.msra.mxu0 0.0
  %282 = vmatprep.subr.mxu0 0.0
  %283 = vmatpush1.msra.mxu0 0.0
  %284 = vmatprep.subr.mxu0 0.0
  %285 = vmatpush1.msra.mxu0 0.0
  %286 = vmatprep.subr.mxu0 0.0
  %287 = vmatpush1.msra.mxu0 %v250
  %288 = vmatprep.subr.mxu0 0.0
  %289 = vmatpush1.msra.mxu0 %v249
  %290 = vmatprep.subr.mxu0 0.0
  %291 = vmatpush1.msra.mxu0 %v248
  %292 = vmatprep.subr.mxu0 0.0
  %293 = vmatpush1.msra.mxu0 %v247
  %294 = vmatprep.subr.mxu0 0.0
  %295 = vmatpush2.msra.mxu0 0.0
  %296 = vmatprep.subr.mxu0 0.0
  %297 = vmatpush2.msra.mxu0 0.0
  %298 = vmatprep.subr.mxu0 0.0
  %299 = vmatpush2.msra.mxu0 0.0
  %300 = vmatprep.subr.mxu0 0.0
  %301 = vmatpush2.msra.mxu0 0.0
  %302 = vmatprep.subr.mxu0 0.0
  %303 = vmatpush2.msra.mxu0 0.0
  %304 = vmatprep.subr.mxu0 0.0
  %305 = vmatpush2.msra.mxu0 0.0
  %306 = vmatprep.subr.mxu0 0.0
  %307 = vmatpush2.msra.mxu0 0.0
  %308 = vmatprep.subr.mxu0 0.0
  %309 = vmatpush2.msra.mxu0 0.0
  %310 = vmatprep.subr.mxu0 0.0
  %311 = vmatpush2.msra.mxu0 0.0
  %312 = vmatprep.subr.mxu0 0.0
  %313 = vmatpush2.msra.mxu0 0.0
  %314 = vmatprep.subr.mxu0 0.0
  %315 = vmatpush2.msra.mxu0 0.0
  %316 = vmatprep.subr.mxu0 0.0
  %317 = vmatpush2.msra.mxu0 0.0
  %318 = vmatprep.subr.mxu0 0.0
  %319 = vmatpush2.msra.mxu0 0.0
  %320 = vmatprep.subr.mxu0 0.0
  %321 = vmatpush2.msra.mxu0 0.0
  %322 = vmatprep.subr.mxu0 0.0
  %323 = vmatpush2.msra.mxu0 0.0
  %324 = vmatprep.subr.mxu0 0.0
  %325 = vmatpush2.msra.mxu0 0.0
  %326 = vmatprep.mubr.f32.mxu0 0.0
  %327 = vmatmul.mubr.f32.gmra.mxu0 %v260
  %v328 = vpop.f32.mrf.mxu0
  %v329 = vadd.f32 %v256, %v328
  %v330 = vpop.f32.mrf.mxu0
  %331 = vdwg.mxu0
  %vm332 = vcmask 7168
  %333 = vst.msk [vmem:[%s11] sm:$0xff] %vm332, %v329
  // Predicated region
  $region46: #{tpu_custom_call.1} parent=0 // pred_check
    _
  $region47: #{tpu_custom_call.1} parent=0 // pred_check_branch
    %335 = sbr.rel (0) target = $region49
  $region48: #{tpu_custom_call.1} parent=0 // pred_region
    _
  $region49: #{tpu_custom_call.1} parent=0 // pred_fallthru
    _
  // Predicated region
  $region50: #{tpu_custom_call.1} parent=0 // pred_check
    _
  $region51: #{tpu_custom_call.1} parent=0 // pred_check_branch
    %337 = sbr.rel (0) target = $region53
  $region52: #{tpu_custom_call.1} parent=0 // pred_region
    _
  $region53: #{tpu_custom_call.1} parent=0 // pred_fallthru
    _

</llo_original>
